<compile_context>
chip_gen: v6e
topology: v6e:2x2x1
jax: 0.10.0
libtpu: 0.0.40
codegen_flags: <defaults>
</compile_context>

<pallas_src>
import jax
import jax.numpy as jnp
from jax.experimental import pallas as pl
from jax.experimental.pallas import tpu as pltpu

FEAT_DIM = 128
AUX_DIM = 4            # velocity (2) + intention (2)
IN_DIM = FEAT_DIM + AUX_DIM   # 132
OUT_DIM = 64
DEFAULT_TILE_ROWS = 2048      # packed rows per grid step (= 4096 batch rows)


def _round_up(x, m):
    return ((x + m - 1) // m) * m


def _pad_rows(x, rows):
    pad = rows - x.shape[0]
    return x if pad == 0 else jnp.pad(x, ((0, pad), (0, 0)))


def pack_params(weight, bias):
    """Pack Linear params once (outside the forward).

    weight: [64, 132] (PyTorch nn.Linear layout), bias: [64]
    Returns (w2 [256,128], wa2 [8,128], b2 [1,128]) block-diagonal packed
    params for the pair-packed kernel.
    """
    wt = weight.T.astype(jnp.float32)            # [132, 64]
    wf = wt[:FEAT_DIM]                           # [128, 64] feature weights
    wa = wt[FEAT_DIM:]                           # [4, 64]   vel+intention weights
    zf = jnp.zeros_like(wf)
    za = jnp.zeros_like(wa)
    w2 = jnp.concatenate(
        [jnp.concatenate([wf, zf], axis=1),
         jnp.concatenate([zf, wf], axis=1)], axis=0)          # [256, 128]
    wa2 = jnp.concatenate(
        [jnp.concatenate([wa, za], axis=1),
         jnp.concatenate([za, wa], axis=1)], axis=0)          # [8, 128]
    b2 = jnp.tile(bias.astype(jnp.float32).reshape(1, OUT_DIM), (1, 2))  # [1, 128]
    return w2, wa2, b2


def statenet_kernel(feat_ref, aux_ref, w_ref, wa_ref, b_ref, o_ref):
    # Feature contribution for both packed batch rows: single MXU pass,
    # [TR,256] @ [256,128] -> [TR,128] (lane-dense).
    acc = jnp.dot(feat_ref[...], w_ref[...],
                  preferred_element_type=jnp.float32)

    # velocity/intention contribution on the VPU: 8 broadcast outer-product
    # FMAs against the resident block-diagonal [8,128] weight (no MXU pass,
    # no lane-padded tiny matmuls).
    aux = aux_ref[...].astype(jnp.float32)       # [TR, 8]
    wa = wa_ref[...]                             # [8, 128]
    for k in range(2 * AUX_DIM):
        acc = acc + aux[:, k:k + 1] * wa[k:k + 1, :]

    acc = acc + b_ref[...]                       # bias broadcast over rows
    o_ref[...] = jnp.tanh(acc).astype(o_ref.dtype)


def statenet_forward(feature, velocity, intention, packed_params,
                     *, tile_rows=DEFAULT_TILE_ROWS):
    """feature [B,128], velocity [B,2], intention [B,2].

    packed_params = pack_params(weight, bias)  (built once, outside).
    Returns tanh(concat(feature, velocity, intention) @ W.T + b)  -> [B, 64].
    """
    B = feature.shape[0]
    r_needed = -(-B // 2)                         # packed rows = ceil(B/2)
    tr = min(tile_rows, _round_up(r_needed, 8))   # tile (multiple of 8 sublanes)
    rp = _round_up(r_needed, tr)                  # padded packed rows
    bp = 2 * rp                                   # padded batch rows

    aux = jnp.concatenate([velocity, intention], axis=-1)        # [B, 4]
    feat2 = _pad_rows(feature.astype(jnp.float32), bp).reshape(rp, 2 * FEAT_DIM)
    aux2 = _pad_rows(aux.astype(jnp.float32), bp).reshape(rp, 2 * AUX_DIM)
    w2, wa2, b2 = packed_params

    grid = (rp // tr,)
    out2 = pl.pallas_call(
        statenet_kernel,
        out_shape=jax.ShapeDtypeStruct((rp, 2 * OUT_DIM), jnp.float32),
        grid=grid,
        in_specs=[
            pl.BlockSpec((tr, 2 * FEAT_DIM), lambda i: (i, 0)),   # streamed
            pl.BlockSpec((tr, 2 * AUX_DIM), lambda i: (i, 0)),    # streamed
            pl.BlockSpec((2 * FEAT_DIM, 2 * OUT_DIM), lambda i: (0, 0)),  # resident
            pl.BlockSpec((2 * AUX_DIM, 2 * OUT_DIM), lambda i: (0, 0)),   # resident
            pl.BlockSpec((1, 2 * OUT_DIM), lambda i: (0, 0)),             # resident
        ],
        out_specs=pl.BlockSpec((tr, 2 * OUT_DIM), lambda i: (i, 0)),
        compiler_params=pltpu.CompilerParams(
            dimension_semantics=("parallel",)),
    )(feat2, aux2, w2, wa2, b2)

    # Free row-major view back to per-batch-row layout, drop padding rows.
    return out2.reshape(bp, OUT_DIM)[:B].astype(feature.dtype)


def make_params():
    """Deterministic orthogonal init of Linear(132, 64) (gain=1), zero bias."""
    key = jax.random.PRNGKey(0)
    a = jax.random.normal(key, (IN_DIM, OUT_DIM), dtype=jnp.float32)
    q, _ = jnp.linalg.qr(a)                       # [132, 64], orthonormal cols
    weight = q.T.astype(jnp.float32)              # [64, 132] (PyTorch layout)
    bias = jnp.zeros((OUT_DIM,), dtype=jnp.float32)
    return weight, bias


if __name__ == "__main__":
    key = jax.random.PRNGKey(0)
    kf, kv, ki = jax.random.split(key, 3)
    B = 8
    feature = jax.random.normal(kf, (B, FEAT_DIM), dtype=jnp.float32)
    velocity = jax.random.normal(kv, (B, 2), dtype=jnp.float32)
    intention = jax.random.normal(ki, (B, 2), dtype=jnp.float32)

    weight, bias = make_params()
    packed = pack_params(weight, bias)            # built once, reused per call

    out = statenet_forward(feature, velocity, intention, packed)
    out = jax.block_until_ready(out)

    # reference (plain JAX) for sanity
    state = jnp.concatenate([feature, velocity, intention], axis=-1)
    ref = jnp.tanh(state @ weight.T + bias)
    assert out.shape == (B, OUT_DIM)
    assert jnp.allclose(out, ref, atol=1e-5, rtol=1e-5)

    print("KERNEL_OK")
</pallas_src>

<mosaic_0001>
module attributes {stable_mosaic.version = 11 : i64} {
  func.func @statenet_kernel(%arg0: i32, %arg1: memref<8x256xf32, #tpu.memory_space<vmem>>, %arg2: memref<8x8xf32, #tpu.memory_space<vmem>>, %arg3: memref<256x128xf32, #tpu.memory_space<vmem>>, %arg4: memref<8x128xf32, #tpu.memory_space<vmem>>, %arg5: memref<1x128xf32, #tpu.memory_space<vmem>>, %arg6: memref<8x128xf32, #tpu.memory_space<vmem>>) attributes {dimension_semantics = [#tpu.dimension_semantics<parallel>], iteration_bounds = array<i64: 1>, scalar_prefetch = 0 : i64, scratch_operands = 0 : i64, tpu.core_type = #tpu.core_type<tc>, window_params = [{transform_indices = @transform_0, window_bounds = array<i64: 8, 256>}, {transform_indices = @transform_1, window_bounds = array<i64: 8, 8>}, {pipeline_mode = #tpu.pipeline_mode<synchronous>, transform_indices = @transform_2, window_bounds = array<i64: 256, 128>}, {pipeline_mode = #tpu.pipeline_mode<synchronous>, transform_indices = @transform_3, window_bounds = array<i64: 8, 128>}, {pipeline_mode = #tpu.pipeline_mode<synchronous>, transform_indices = @transform_4, window_bounds = array<i64: 1, 128>}, {transform_indices = @transform_5, window_bounds = array<i64: 8, 128>}]} {
    %c0 = arith.constant 0 : index
    %c0_0 = arith.constant 0 : index
    %0 = vector.load %arg1[%c0, %c0_0] : memref<8x256xf32, #tpu.memory_space<vmem>>, vector<8x256xf32>
    %c0_1 = arith.constant 0 : index
    %c0_2 = arith.constant 0 : index
    %1 = vector.load %arg3[%c0_1, %c0_2] : memref<256x128xf32, #tpu.memory_space<vmem>>, vector<256x128xf32>
    %cst = arith.constant dense<0.000000e+00> : vector<8x128xf32>
    %2 = tpu.matmul %0, %1, %cst {dimension_numbers = #tpu.dot_dimension_numbers<[1], [0], [0], [1], [0, 0, 1, 1], [], []>} : vector<8x256xf32>, vector<256x128xf32>, vector<8x128xf32> -> vector<8x128xf32>
    %c0_3 = arith.constant 0 : index
    %c0_4 = arith.constant 0 : index
    %3 = vector.load %arg2[%c0_3, %c0_4] : memref<8x8xf32, #tpu.memory_space<vmem>>, vector<8x8xf32>
    %c0_5 = arith.constant 0 : index
    %c0_6 = arith.constant 0 : index
    %4 = vector.load %arg4[%c0_5, %c0_6] : memref<8x128xf32, #tpu.memory_space<vmem>>, vector<8x128xf32>
    %5 = vector.extract_strided_slice %3 {offsets = [0, 0], sizes = [8, 1], strides = [1, 1]} : vector<8x8xf32> to vector<8x1xf32>
    %6 = vector.extract_strided_slice %4 {offsets = [0, 0], sizes = [1, 128], strides = [1, 1]} : vector<8x128xf32> to vector<1x128xf32>
    %7 = vector.broadcast %5 : vector<8x1xf32> to vector<8x128xf32>
    %8 = vector.broadcast %6 : vector<1x128xf32> to vector<8x128xf32>
    %9 = arith.mulf %7, %8 : vector<8x128xf32>
    %10 = arith.addf %2, %9 : vector<8x128xf32>
    %11 = vector.extract_strided_slice %3 {offsets = [0, 1], sizes = [8, 1], strides = [1, 1]} : vector<8x8xf32> to vector<8x1xf32>
    %12 = vector.extract_strided_slice %4 {offsets = [1, 0], sizes = [1, 128], strides = [1, 1]} : vector<8x128xf32> to vector<1x128xf32>
    %13 = vector.broadcast %11 : vector<8x1xf32> to vector<8x128xf32>
    %14 = vector.broadcast %12 : vector<1x128xf32> to vector<8x128xf32>
    %15 = arith.mulf %13, %14 : vector<8x128xf32>
    %16 = arith.addf %10, %15 : vector<8x128xf32>
    %17 = vector.extract_strided_slice %3 {offsets = [0, 2], sizes = [8, 1], strides = [1, 1]} : vector<8x8xf32> to vector<8x1xf32>
    %18 = vector.extract_strided_slice %4 {offsets = [2, 0], sizes = [1, 128], strides = [1, 1]} : vector<8x128xf32> to vector<1x128xf32>
    %19 = vector.broadcast %17 : vector<8x1xf32> to vector<8x128xf32>
    %20 = vector.broadcast %18 : vector<1x128xf32> to vector<8x128xf32>
    %21 = arith.mulf %19, %20 : vector<8x128xf32>
    %22 = arith.addf %16, %21 : vector<8x128xf32>
    %23 = vector.extract_strided_slice %3 {offsets = [0, 3], sizes = [8, 1], strides = [1, 1]} : vector<8x8xf32> to vector<8x1xf32>
    %24 = vector.extract_strided_slice %4 {offsets = [3, 0], sizes = [1, 128], strides = [1, 1]} : vector<8x128xf32> to vector<1x128xf32>
    %25 = vector.broadcast %23 : vector<8x1xf32> to vector<8x128xf32>
    %26 = vector.broadcast %24 : vector<1x128xf32> to vector<8x128xf32>
    %27 = arith.mulf %25, %26 : vector<8x128xf32>
    %28 = arith.addf %22, %27 : vector<8x128xf32>
    %29 = vector.extract_strided_slice %3 {offsets = [0, 4], sizes = [8, 1], strides = [1, 1]} : vector<8x8xf32> to vector<8x1xf32>
    %30 = vector.extract_strided_slice %4 {offsets = [4, 0], sizes = [1, 128], strides = [1, 1]} : vector<8x128xf32> to vector<1x128xf32>
    %31 = vector.broadcast %29 : vector<8x1xf32> to vector<8x128xf32>
    %32 = vector.broadcast %30 : vector<1x128xf32> to vector<8x128xf32>
    %33 = arith.mulf %31, %32 : vector<8x128xf32>
    %34 = arith.addf %28, %33 : vector<8x128xf32>
    %35 = vector.extract_strided_slice %3 {offsets = [0, 5], sizes = [8, 1], strides = [1, 1]} : vector<8x8xf32> to vector<8x1xf32>
    %36 = vector.extract_strided_slice %4 {offsets = [5, 0], sizes = [1, 128], strides = [1, 1]} : vector<8x128xf32> to vector<1x128xf32>
    %37 = vector.broadcast %35 : vector<8x1xf32> to vector<8x128xf32>
    %38 = vector.broadcast %36 : vector<1x128xf32> to vector<8x128xf32>
    %39 = arith.mulf %37, %38 : vector<8x128xf32>
    %40 = arith.addf %34, %39 : vector<8x128xf32>
    %41 = vector.extract_strided_slice %3 {offsets = [0, 6], sizes = [8, 1], strides = [1, 1]} : vector<8x8xf32> to vector<8x1xf32>
    %42 = vector.extract_strided_slice %4 {offsets = [6, 0], sizes = [1, 128], strides = [1, 1]} : vector<8x128xf32> to vector<1x128xf32>
    %43 = vector.broadcast %41 : vector<8x1xf32> to vector<8x128xf32>
    %44 = vector.broadcast %42 : vector<1x128xf32> to vector<8x128xf32>
    %45 = arith.mulf %43, %44 : vector<8x128xf32>
    %46 = arith.addf %40, %45 : vector<8x128xf32>
    %47 = vector.extract_strided_slice %3 {offsets = [0, 7], sizes = [8, 1], strides = [1, 1]} : vector<8x8xf32> to vector<8x1xf32>
    %48 = vector.extract_strided_slice %4 {offsets = [7, 0], sizes = [1, 128], strides = [1, 1]} : vector<8x128xf32> to vector<1x128xf32>
    %49 = vector.broadcast %47 : vector<8x1xf32> to vector<8x128xf32>
    %50 = vector.broadcast %48 : vector<1x128xf32> to vector<8x128xf32>
    %51 = arith.mulf %49, %50 : vector<8x128xf32>
    %52 = arith.addf %46, %51 : vector<8x128xf32>
    %c0_7 = arith.constant 0 : index
    %c0_8 = arith.constant 0 : index
    %53 = vector.load %arg5[%c0_7, %c0_8] : memref<1x128xf32, #tpu.memory_space<vmem>>, vector<1x128xf32>
    %54 = vector.broadcast %53 : vector<1x128xf32> to vector<8x128xf32>
    %55 = arith.addf %52, %54 : vector<8x128xf32>
    %56 = math.tanh %55 : vector<8x128xf32>
    %c0_9 = arith.constant 0 : index
    %c0_10 = arith.constant 0 : index
    %57 = vector.load %arg6[%c0_9, %c0_10] : memref<8x128xf32, #tpu.memory_space<vmem>>, vector<8x128xf32>
    tpu.vector_store %arg6[%c0_9, %c0_10], %56 {strides = array<i32>} : memref<8x128xf32, #tpu.memory_space<vmem>>, vector<8x128xf32>,
    return
  }
  func.func @transform_0(%arg0: i32) -> (i32, i32) {
    %c0_i32 = arith.constant 0 : i32
    %c0_i32_0 = arith.constant 0 : i32
    return %arg0, %c0_i32 : i32, i32
  }
  func.func @transform_1(%arg0: i32) -> (i32, i32) {
    %c0_i32 = arith.constant 0 : i32
    %c0_i32_0 = arith.constant 0 : i32
    return %arg0, %c0_i32 : i32, i32
  }
  func.func @transform_2(%arg0: i32) -> (i32, i32) {
    %c0_i32 = arith.constant 0 : i32
    %c0_i32_0 = arith.constant 0 : i32
    %c0_i32_1 = arith.constant 0 : i32
    return %c0_i32, %c0_i32_0 : i32, i32
  }
  func.func @transform_3(%arg0: i32) -> (i32, i32) {
    %c0_i32 = arith.constant 0 : i32
    %c0_i32_0 = arith.constant 0 : i32
    %c0_i32_1 = arith.constant 0 : i32
    return %c0_i32, %c0_i32_0 : i32, i32
  }
  func.func @transform_4(%arg0: i32) -> (i32, i32) {
    %c0_i32 = arith.constant 0 : i32
    %c0_i32_0 = arith.constant 0 : i32
    %c0_i32_1 = arith.constant 0 : i32
    return %c0_i32, %c0_i32_0 : i32, i32
  }
  func.func @transform_5(%arg0: i32) -> (i32, i32) {
    %c0_i32 = arith.constant 0 : i32
    %c0_i32_0 = arith.constant 0 : i32
    return %arg0, %c0_i32 : i32, i32
  }
}

</mosaic_0001>

<llo_original>
// kernel: tpu_custom_call.1
$region0: #{tpu_custom_call.1}
  #allocation0 [shape = 'u32[]', space=smem, size = 0x4, offset = 0x4, fixed_abs, tag = 'smem constant byte address 0x4 - core index']
  #allocation1 [shape = 'u32[144,128]{1,0:T(1,128)}', space=vmem, size = 0x12000, scoped, tag = 'internal scratch']
  %s0 = inlined_call_operand.hbm [shape: f32[8,256], index: 0, kind: input, shape index: {}]
  %s1 = inlined_call_operand.hbm [shape: f32[8,8], index: 1, kind: input, shape index: {}]
  %s2 = inlined_call_operand.hbm [shape: f32[256,128], index: 2, kind: input, shape index: {}]
  %s3 = inlined_call_operand.hbm [shape: f32[8,128], index: 3, kind: input, shape index: {}]
  %s4 = inlined_call_operand.vmem [shape: f32[1,128], index: 4, kind: input, shape index: {}]
  %s5 = inlined_call_operand.hbm [shape: f32[8,128], index: 5, kind: output, shape index: {}]
  %s6 = sld [smem:[#allocation0]]
  $region46: #{tpu_custom_call.1} parent=0
    _
  %s8 = ssub.s32 1, %s6
  %s9 = scalar_select 0, %s8, %s6
  $region1: #{tpu_custom_call.1} parent=0
    #allocation2 [shape = 'u8[8192]{0}', space=vmem, size = 0x2000, scoped, tag = 'input window, operand 0, single buffered']
    #allocation3 [shape = 's32[1]{0}', space=sflag, size = 0x4, scoped, tag = 'scoped memory for tpu_custom_call.1']
    #allocation4 [shape = 's32[1]{0}', space=sflag, size = 0x4, scoped, tag = 'scoped memory for tpu_custom_call.1']
    #allocation5 [shape = 'u8[4096]{0}', space=vmem, size = 0x1000, scoped, tag = 'input window, operand 1, single buffered']
    #allocation6 [shape = 's32[1]{0}', space=sflag, size = 0x4, scoped, tag = 'scoped memory for tpu_custom_call.1']
    #allocation7 [shape = 'u8[131072]{0}', space=vmem, size = 0x20000, scoped, tag = 'input window, operand 2, single buffered']
    #allocation8 [shape = 'u8[4096]{0}', space=vmem, size = 0x1000, scoped, tag = 'input window, operand 3, single buffered']
    #allocation9 [shape = 's32[1]{0}', space=sflag, size = 0x4, scoped, tag = 'scoped memory for tpu_custom_call.1']
    #allocation10 [shape = 'u8[4096]{0}', space=vmem, size = 0x1000, scoped, tag = 'output window, operand 0, single buffered']
    %10 = vsyncpa [#allocation3], 0
    %11 = vsyncpa [#allocation6], 0
    %12 = vsyncpa [#allocation9], 0
    %13 = vsyncpa [#allocation4], 0
    // Predicated region
    $region2: #{tpu_custom_call.1} parent=1 // pred_check
      _
    $region3: #{tpu_custom_call.1} parent=1 // pred_check_branch
      %15 = sbr.rel (0) target = $region5
    $region4: #{tpu_custom_call.1} parent=1 // pred_region
      %s17 = ssub.s32 256, 256
      %18 = vsyncadd [#allocation3], %s17
      %s20 = sshll.u32 [#allocation2], 4
      %s21 = int_to_ptr.vmem [resolvable:$true] %s20
      %23 = dma.hbm_to_vmem [thread:$0]  %s0, 256, %s21, [#allocation3]
    $region5: #{tpu_custom_call.1} parent=1 // pred_fallthru
      _
    // Predicated region
    $region6: #{tpu_custom_call.1} parent=1 // pred_check
      _
    $region7: #{tpu_custom_call.1} parent=1 // pred_check_branch
      %25 = sbr.rel (0) target = $region9
    $region8: #{tpu_custom_call.1} parent=1 // pred_region
      %s27 = ssub.s32 128, 128
      %28 = vsyncadd [#allocation6], %s27
      %s30 = sshll.u32 [#allocation5], 4
      %s31 = int_to_ptr.vmem [resolvable:$true] %s30
      %33 = dma.hbm_to_vmem [thread:$0]  %s1, 128, %s31, [#allocation6]
    $region9: #{tpu_custom_call.1} parent=1 // pred_fallthru
      _
    // Predicated region
    $region10: #{tpu_custom_call.1} parent=1 // pred_check
      _
    $region11: #{tpu_custom_call.1} parent=1 // pred_check_branch
      %35 = sbr.rel (0) target = $region13
    $region12: #{tpu_custom_call.1} parent=1 // pred_region
      %s37 = ssub.s32 4096, 4096
      %38 = vsyncadd [#allocation6], %s37
      %s39 = sshll.u32 [#allocation7], 4
      %s40 = int_to_ptr.vmem [resolvable:$true] %s39
      %45 = dma.hbm_to_vmem [thread:$0]  %s2, 4096, %s40, [#allocation6], 128, 128, 8
    $region13: #{tpu_custom_call.1} parent=1 // pred_fallthru
      _
    // Predicated region
    $region14: #{tpu_custom_call.1} parent=1 // pred_check
      _
    $region15: #{tpu_custom_call.1} parent=1 // pred_check_branch
      %47 = sbr.rel (0) target = $region17
    $region16: #{tpu_custom_call.1} parent=1 // pred_region
      %s49 = ssub.s32 128, 128
      %50 = vsyncadd [#allocation9], %s49
      %s52 = sshll.u32 [#allocation8], 4
      %s53 = int_to_ptr.vmem [resolvable:$true] %s52
      %55 = dma.hbm_to_vmem [thread:$0]  %s3, 128, %s53, [#allocation9]
    $region17: #{tpu_custom_call.1} parent=1 // pred_fallthru
      _
    // Predicated region
    $region18: #{tpu_custom_call.1} parent=1 // pred_check
      _
    $region19: #{tpu_custom_call.1} parent=1 // pred_check_branch
      %57 = sbr.rel (0) target = $region21
    $region20: #{tpu_custom_call.1} parent=1 // pred_region
      _
    $region21: #{tpu_custom_call.1} parent=1 // pred_fallthru
      _
    // Predicated region
    $region22: #{tpu_custom_call.1} parent=1 // pred_check
      _
    $region23: #{tpu_custom_call.1} parent=1 // pred_check_branch
      %59 = sbr.rel (0) target = $region25
    $region24: #{tpu_custom_call.1} parent=1 // pred_region
      %60 = dma.done [#allocation3], 256
    $region25: #{tpu_custom_call.1} parent=1 // pred_fallthru
      _
    // Predicated region
    $region26: #{tpu_custom_call.1} parent=1 // pred_check
      _
    $region27: #{tpu_custom_call.1} parent=1 // pred_check_branch
      %62 = sbr.rel (0) target = $region29
    $region28: #{tpu_custom_call.1} parent=1 // pred_region
      %63 = dma.done [#allocation6], 128
    $region29: #{tpu_custom_call.1} parent=1 // pred_fallthru
      _
    // Predicated region
    $region30: #{tpu_custom_call.1} parent=1 // pred_check
      _
    $region31: #{tpu_custom_call.1} parent=1 // pred_check_branch
      %65 = sbr.rel (0) target = $region33
    $region32: #{tpu_custom_call.1} parent=1 // pred_region
      %66 = dma.done [#allocation6], 4096
    $region33: #{tpu_custom_call.1} parent=1 // pred_fallthru
      _
    // Predicated region
    $region34: #{tpu_custom_call.1} parent=1 // pred_check
      _
    $region35: #{tpu_custom_call.1} parent=1 // pred_check_branch
      %68 = sbr.rel (0) target = $region37
    $region36: #{tpu_custom_call.1} parent=1 // pred_region
      %69 = dma.done [#allocation9], 128
    $region37: #{tpu_custom_call.1} parent=1 // pred_fallthru
      _
    %v70 = vld [vmem:[#allocation2] sm:$0xff]
    %v71 = vld [vmem:[#allocation2 + $0x8] sm:$0xff]
    %v72 = vld [vmem:[#allocation7] sm:$0xff]
    %v73 = vld [vmem:[#allocation7 + $0x8] sm:$0xff]
    %v74 = vld [vmem:[#allocation7 + $0x10] sm:$0xff]
    %v75 = vld [vmem:[#allocation7 + $0x18] sm:$0xff]
    %v76 = vld [vmem:[#allocation7 + $0x20] sm:$0xff]
    %v77 = vld [vmem:[#allocation7 + $0x28] sm:$0xff]
    %v78 = vld [vmem:[#allocation7 + $0x30] sm:$0xff]
    %v79 = vld [vmem:[#allocation7 + $0x38] sm:$0xff]
    %v80 = vld [vmem:[#allocation7 + $0x40] sm:$0xff]
    %v81 = vld [vmem:[#allocation7 + $0x48] sm:$0xff]
    %v82 = vld [vmem:[#allocation7 + $0x50] sm:$0xff]
    %v83 = vld [vmem:[#allocation7 + $0x58] sm:$0xff]
    %v84 = vld [vmem:[#allocation7 + $0x60] sm:$0xff]
    %v85 = vld [vmem:[#allocation7 + $0x68] sm:$0xff]
    %v86 = vld [vmem:[#allocation7 + $0x70] sm:$0xff]
    %v87 = vld [vmem:[#allocation7 + $0x78] sm:$0xff]
    %v88 = vld [vmem:[#allocation7 + $0x80] sm:$0xff]
    %v89 = vld [vmem:[#allocation7 + $0x88] sm:$0xff]
    %v90 = vld [vmem:[#allocation7 + $0x90] sm:$0xff]
    %v91 = vld [vmem:[#allocation7 + $0x98] sm:$0xff]
    %v92 = vld [vmem:[#allocation7 + $0xa0] sm:$0xff]
    %v93 = vld [vmem:[#allocation7 + $0xa8] sm:$0xff]
    %v94 = vld [vmem:[#allocation7 + $0xb0] sm:$0xff]
    %v95 = vld [vmem:[#allocation7 + $0xb8] sm:$0xff]
    %v96 = vld [vmem:[#allocation7 + $0xc0] sm:$0xff]
    %v97 = vld [vmem:[#allocation7 + $0xc8] sm:$0xff]
    %v98 = vld [vmem:[#allocation7 + $0xd0] sm:$0xff]
    %v99 = vld [vmem:[#allocation7 + $0xd8] sm:$0xff]
    %v100 = vld [vmem:[#allocation7 + $0xe0] sm:$0xff]
    %v101 = vld [vmem:[#allocation7 + $0xe8] sm:$0xff]
    %v102 = vld [vmem:[#allocation7 + $0xf0] sm:$0xff]
    %v103 = vld [vmem:[#allocation7 + $0xf8] sm:$0xff]
    %v104 = vld [vmem:[#allocation5] sm:$0xff]
    %v105 = vld [vmem:[#allocation8] sm:$0xff]
    %107 = vset.pattern.permute.xlu0 0
    %108 = vperm.xlu0 %107, %v104
    %v109 = vpop.permute.xlu0 %108
    %v111 = vlaneseq
    %v112 = vshrl.u32 %v111, 7
    %v113 = vsub.s32 0, %v112
    %v114 = vrot.slane %v105, %v113
    %v115 = vmul.f32 %v109, %v114
    %116 = vmatprep.subr.mxu0 0.0
    %117 = vmatpush1.msra.mxu0 %v87
    %118 = vmatprep.subr.mxu0 0.0
    %119 = vmatpush1.msra.mxu0 %v86
    %120 = vmatprep.subr.mxu0 0.0
    %121 = vmatpush1.msra.mxu0 %v85
    %122 = vmatprep.subr.mxu0 0.0
    %123 = vmatpush1.msra.mxu0 %v84
    %124 = vmatprep.subr.mxu0 0.0
    %125 = vmatpush1.msra.mxu0 %v83
    %126 = vmatprep.subr.mxu0 0.0
    %127 = vmatpush1.msra.mxu0 %v82
    %128 = vmatprep.subr.mxu0 0.0
    %129 = vmatpush1.msra.mxu0 %v81
    %130 = vmatprep.subr.mxu0 0.0
    %131 = vmatpush1.msra.mxu0 %v80
    %132 = vmatprep.subr.mxu0 0.0
    %133 = vmatpush1.msra.mxu0 %v79
    %134 = vmatprep.subr.mxu0 0.0
    %135 = vmatpush1.msra.mxu0 %v78
    %136 = vmatprep.subr.mxu0 0.0
    %137 = vmatpush1.msra.mxu0 %v77
    %138 = vmatprep.subr.mxu0 0.0
    %139 = vmatpush1.msra.mxu0 %v76
    %140 = vmatprep.subr.mxu0 0.0
    %141 = vmatpush1.msra.mxu0 %v75
    %142 = vmatprep.subr.mxu0 0.0
    %143 = vmatpush1.msra.mxu0 %v74
    %144 = vmatprep.subr.mxu0 0.0
    %145 = vmatpush1.msra.mxu0 %v73
    %146 = vmatprep.subr.mxu0 0.0
    %147 = vmatpush1.msra.mxu0 %v72
    %148 = vmatprep.subr.mxu0 0.0
    %149 = vmatpush2.msra.mxu0 %v103
    %150 = vmatprep.subr.mxu0 0.0
    %151 = vmatpush2.msra.mxu0 %v102
    %152 = vmatprep.subr.mxu0 0.0
    %153 = vmatpush2.msra.mxu0 %v101
    %154 = vmatprep.subr.mxu0 0.0
    %155 = vmatpush2.msra.mxu0 %v100
    %156 = vmatprep.subr.mxu0 0.0
    %157 = vmatpush2.msra.mxu0 %v99
    %158 = vmatprep.subr.mxu0 0.0
    %159 = vmatpush2.msra.mxu0 %v98
    %160 = vmatprep.subr.mxu0 0.0
    %161 = vmatpush2.msra.mxu0 %v97
    %162 = vmatprep.subr.mxu0 0.0
    %163 = vmatpush2.msra.mxu0 %v96
    %164 = vmatprep.subr.mxu0 0.0
    %165 = vmatpush2.msra.mxu0 %v95
    %166 = vmatprep.subr.mxu0 0.0
    %167 = vmatpush2.msra.mxu0 %v94
    %168 = vmatprep.subr.mxu0 0.0
    %169 = vmatpush2.msra.mxu0 %v93
    %170 = vmatprep.subr.mxu0 0.0
    %171 = vmatpush2.msra.mxu0 %v92
    %172 = vmatprep.subr.mxu0 0.0
    %173 = vmatpush2.msra.mxu0 %v91
    %174 = vmatprep.subr.mxu0 0.0
    %175 = vmatpush2.msra.mxu0 %v90
    %176 = vmatprep.subr.mxu0 0.0
    %177 = vmatpush2.msra.mxu0 %v89
    %178 = vmatprep.subr.mxu0 0.0
    %179 = vmatpush2.msra.mxu0 %v88
    %180 = vmatprep.mubr.f32.mxu0 %v71
    %181 = vmatmul.mubr.f32.gmra.mxu0 %v70
    %v182 = vpop.f32.mrf.mxu0
    %v183 = vadd.f32 %v115, %v182
    %v184 = vpop.f32.mrf.mxu0
    %185 = vdwg.mxu0
    %186 = vset.pattern.permute.xlu0 1
    %187 = vperm.xlu0 %186, %v104
    %v188 = vpop.permute.xlu0 %187
    %v190 = vlaneseq
    %v191 = vshrl.u32 %v190, 7
    %v192 = vsub.s32 1, %v191
    %v193 = vrot.slane %v105, %v192
    %v194 = vmul.f32 %v188, %v193
    %v195 = vadd.f32 %v183, %v194
    %196 = vset.pattern.permute.xlu0 2
    %197 = vperm.xlu0 %196, %v104
    %v198 = vpop.permute.xlu0 %197
    %v200 = vlaneseq
    %v201 = vshrl.u32 %v200, 7
    %v202 = vsub.s32 2, %v201
    %v203 = vrot.slane %v105, %v202
    %v204 = vmul.f32 %v198, %v203
    %v205 = vadd.f32 %v195, %v204
    %206 = vset.pattern.permute.xlu0 3
    %207 = vperm.xlu0 %206, %v104
    %v208 = vpop.permute.xlu0 %207
    %v210 = vlaneseq
    %v211 = vshrl.u32 %v210, 7
    %v212 = vsub.s32 3, %v211
    %v213 = vrot.slane %v105, %v212
    %v214 = vmul.f32 %v208, %v213
    %v215 = vadd.f32 %v205, %v214
    %216 = vset.pattern.permute.xlu0 4
    %217 = vperm.xlu0 %216, %v104
    %v218 = vpop.permute.xlu0 %217
    %v220 = vlaneseq
    %v221 = vshrl.u32 %v220, 7
    %v222 = vsub.s32 4, %v221
    %v223 = vrot.slane %v105, %v222
    %v224 = vmul.f32 %v218, %v223
    %v225 = vadd.f32 %v215, %v224
    %226 = vset.pattern.permute.xlu0 5
    %227 = vperm.xlu0 %226, %v104
    %v228 = vpop.permute.xlu0 %227
    %v230 = vlaneseq
    %v231 = vshrl.u32 %v230, 7
    %v232 = vsub.s32 5, %v231
    %v233 = vrot.slane %v105, %v232
    %v234 = vmul.f32 %v228, %v233
    %v235 = vadd.f32 %v225, %v234
    %236 = vset.pattern.permute.xlu0 6
    %237 = vperm.xlu0 %236, %v104
    %v238 = vpop.permute.xlu0 %237
    %v240 = vlaneseq
    %v241 = vshrl.u32 %v240, 7
    %v242 = vsub.s32 6, %v241
    %v243 = vrot.slane %v105, %v242
    %v244 = vmul.f32 %v238, %v243
    %v245 = vadd.f32 %v235, %v244
    %246 = vset.pattern.permute.xlu0 7
    %247 = vperm.xlu0 %246, %v104
    %v248 = vpop.permute.xlu0 %247
    %v250 = vlaneseq
    %v251 = vshrl.u32 %v250, 7
    %v252 = vsub.s32 7, %v251
    %v253 = vrot.slane %v105, %v252
    %v254 = vmul.f32 %v248, %v253
    %v255 = vadd.f32 %v245, %v254
    %v256 = vld [vmem:[%s4] sm:$0x1]
    %v258 = vlaneseq
    %v259 = vshrl.u32 %v258, 7
    %v260 = vsub.s32 0, %v259
    %v261 = vrot.slane %v256, %v260
    %v263 = vadd.f32 %v255, %v261
    %v264 = vtanh.pop %v263
    %265 = vst [vmem:[#allocation10] sm:$0xff] %v264
    // Predicated region
    $region38: #{tpu_custom_call.1} parent=1 // pred_check
      _
    $region39: #{tpu_custom_call.1} parent=1 // pred_check_branch
      %267 = sbr.rel (0) target = $region41
    $region40: #{tpu_custom_call.1} parent=1 // pred_region
      %s269 = ssub.s32 128, 128
      %270 = vsyncadd [#allocation4], %s269
      %s272 = sshll.u32 [#allocation10], 4
      %s273 = int_to_ptr.vmem [resolvable:$true] %s272
      %275 = dma.vmem_to_hbm [thread:$0]  %s273, 128, %s5, [#allocation4]
    $region41: #{tpu_custom_call.1} parent=1 // pred_fallthru
      _
    // Predicated region
    $region42: #{tpu_custom_call.1} parent=1 // pred_check
      _
    $region43: #{tpu_custom_call.1} parent=1 // pred_check_branch
      %277 = sbr.rel (0) target = $region45
    $region44: #{tpu_custom_call.1} parent=1 // pred_region
      %278 = dma.done [#allocation4], 128
    $region45: #{tpu_custom_call.1} parent=1 // pred_fallthru
      _
    %279 = vsyncpa [#allocation3], 1
    %280 = vsyncpa [#allocation6], 1
    %281 = vsyncpa [#allocation9], 1
    %282 = vsyncpa [#allocation4], 1

</llo_original>
